<compile_context>
chip_gen: v6e
topology: v6e:2x2x1
jax: 0.10.0
libtpu: 0.0.40
codegen_flags: <defaults>
</compile_context>

<pallas_src>
import functools

import numpy as np
import jax
import jax.numpy as jnp
from jax import lax
from jax.experimental import pallas as pl
from jax.experimental.pallas import tpu as pltpu

_SCALAR_LANES = 128   # packed scalar output row: [loss, loss_operator, loss_metric, 0...]
_MAX_BATCH_TILE = 512


# ----------------------- mask construction (init-time glue) -------------------

def get_joint_nesting_masks(weights, set_first_mode_const=False):
    vector_mask = list(np.cumsum(list(weights)[::-1])[::-1])
    if set_first_mode_const:
        vector_mask = [vector_mask[0]] + vector_mask
    vector_mask = np.asarray(vector_mask, dtype=np.float32)
    matrix_mask = np.minimum(vector_mask[:, None],
                             vector_mask[None, :]).astype(np.float32)
    return vector_mask, matrix_mask


def get_sequential_nesting_masks(L, set_first_mode_const=False):
    if set_first_mode_const:
        L += 1
    vector_mask = np.ones(L, dtype=np.float32)
    matrix_mask = np.triu(np.ones((L, L), dtype=np.float32))
    return vector_mask, matrix_mask


def off_diagonal(x):
    # same trick as torch: flatten, drop last, reshape (n-1, n+1), drop col 0
    n = x.shape[0]
    return x.reshape(-1)[:-1].reshape(n - 1, n + 1)[:, 1:].reshape(-1)


def _batch_tile(B):
    if B <= _MAX_BATCH_TILE:
        return B
    for t in (512, 256, 128):
        if B % t == 0:
            return t
    return B  # fallback: single block


def _vmem_limit(raw_bytes):
    # double-buffer headroom + floor/cap; stays under v7x's 64 MiB physical VMEM
    return int(min(max(2 * raw_bytes + (4 << 20), 16 << 20), 48 << 20))


# ------------------------- in-kernel per-tile loss math ------------------------
#
# With the constant first mode the padded features are Fp=[w, w*f], Gp=[w, w*g]
# (w = batch_weights column, default 1) and every padded quantity decomposes
# algebraically, so no padded (B, L+1) array is ever built:
#   lam[0,0]   = sum_b w_b^2 / B
#   lam[0,1:]  = lam[1:,0] = sum_b w_b^2 f_b / B         (uf / ug)
#   lam[1:,1:] = (w f)^T (w f) / B                        (lam_f / lam_g)
#   gram[b,c]  = w_b (f_b . g_c + 1) w_c
#   rs_joint_b = sum_l (w f)(w g)[b,l] + w_b^2            (row-sum, O(B*L))

def _tile_loss_body(i, j, is_last, f_i, g_j, wcol, wrow, vm1, mmx, mm11,
                    scal_ref, rsj_ref, gram_ref,
                    lamf_acc, lamg_acc, op_acc, w2_acc, uf_acc, ug_acc, *,
                    vm0, mm00, inv_b, add_const, has_w, batch, mxu_dtype):
    # ---- gram tile: w_i * (f_i @ g_j^T [+ 1]) * w_j  (MXU, f32 accumulate) ----
    gram = lax.dot_general(f_i.astype(mxu_dtype), g_j.astype(mxu_dtype),
                           (((1,), (1,)), ((), ())),
                           preferred_element_type=jnp.float32)      # (tb, tb)
    if add_const:
        gram = gram + 1.0
    if has_w:
        gram = (gram * wcol) * wrow
    gram_ref[...] = gram

    # ---- zero the small VMEM accumulators on the first grid step ----
    @pl.when(jnp.logical_and(i == 0, j == 0))
    def _():
        lamf_acc[...] = jnp.zeros_like(lamf_acc)
        lamg_acc[...] = jnp.zeros_like(lamg_acc)
        op_acc[...] = jnp.zeros_like(op_acc)
        w2_acc[...] = jnp.zeros_like(w2_acc)
        uf_acc[...] = jnp.zeros_like(uf_acc)
        ug_acc[...] = jnp.zeros_like(ug_acc)

    # ---- diagonal tiles (i == j): rs_joint row-sums + loss-term accumulation ----
    @pl.when(i == j)
    def _():
        if has_w:
            wf = f_i * wcol
            wg = g_j * wcol
        else:
            wf, wg = f_i, g_j
        prod = wf * wg                                              # (tb, L)
        # rs_joint tile as an O(tb*L) row-sum (no (B,B) select / diag gather)
        rsj = jnp.sum(prod, axis=1, keepdims=True)                  # (tb, 1)
        if add_const:
            rsj = rsj + (wcol * wcol if has_w else 1.0)
        rsj_ref[...] = rsj
        # lam_f / lam_g partial grams over modes (contract batch on the MXU)
        lamf_acc[...] += lax.dot_general(wf, wf, (((0,), (0,)), ((), ())),
                                         preferred_element_type=jnp.float32)
        lamg_acc[...] += lax.dot_general(wg, wg, (((0,), (0,)), ((), ())),
                                         preferred_element_type=jnp.float32)
        op_acc[...] += jnp.sum(vm1 * prod, keepdims=True)           # (1, 1)
        if add_const:
            if has_w:
                w2 = wcol * wcol
                w2_acc[...] += jnp.sum(w2, keepdims=True)
                uf_acc[...] += jnp.sum(w2 * f_i, axis=0, keepdims=True)
                ug_acc[...] += jnp.sum(w2 * g_j, axis=0, keepdims=True)
            else:
                uf_acc[...] += jnp.sum(f_i, axis=0, keepdims=True)
                ug_acc[...] += jnp.sum(g_j, axis=0, keepdims=True)

    # ---- last grid step: finalize scalars, pack into one lane-dense (1,128) row ----
    @pl.when(is_last)
    def _():
        lam_f = lamf_acc[...] * inv_b
        lam_g = lamg_acc[...] * inv_b
        metric = jnp.sum(mm11 * lam_f * lam_g, keepdims=True)       # (1, 1)
        op_sum = op_acc[...]                                        # (1, 1)
        if add_const:
            if has_w:
                s_w2 = w2_acc[...]                                  # sum_b w_b^2
            else:
                s_w2 = jnp.full((1, 1), float(batch), jnp.float32)
            uf = uf_acc[...] * inv_b
            ug = ug_acc[...] * inv_b
            metric = (metric
                      + jnp.sum(mmx * uf * ug, keepdims=True)       # cross terms
                      + mm00 * (s_w2 * inv_b) * (s_w2 * inv_b))     # (0,0) term
            op_sum = op_sum + vm0 * s_w2
        op = (-2.0 * inv_b) * op_sum
        loss = op + metric
        lane = lax.broadcasted_iota(jnp.int32, (1, _SCALAR_LANES), 1)
        scal_ref[...] = (jnp.where(lane == 0, loss, 0.0)
                         + jnp.where(lane == 1, op, 0.0)
                         + jnp.where(lane == 2, metric, 0.0))


# ----------------------------- Pallas kernels ---------------------------------

def _linear_kernel(x_ref, w_ref, b_ref, o_ref):
    # backbone model: o = x @ W + b  (MXU matmul, fp32 accumulate)
    acc = jnp.dot(x_ref[...], w_ref[...], preferred_element_type=jnp.float32)
    o_ref[...] = (acc + b_ref[...]).astype(o_ref.dtype)


def _loss_kernel(*refs, has_w, **consts):
    if has_w:
        (f_ref, g_ref, bwc_ref, bwr_ref, vm1_ref, mmx_ref, mm11_ref,
         scal_ref, rsj_ref, gram_ref,
         lamf, lamg, opa, w2a, ufa, uga) = refs
        wcol, wrow = bwc_ref[...], bwr_ref[...]
    else:
        (f_ref, g_ref, vm1_ref, mmx_ref, mm11_ref,
         scal_ref, rsj_ref, gram_ref,
         lamf, lamg, opa, w2a, ufa, uga) = refs
        wcol = wrow = None
    i, j = pl.program_id(0), pl.program_id(1)
    is_last = jnp.logical_and(i == pl.num_programs(0) - 1,
                              j == pl.num_programs(1) - 1)
    _tile_loss_body(i, j, is_last, f_ref[...], g_ref[...], wcol, wrow,
                    vm1_ref[...], mmx_ref[...], mm11_ref[...],
                    scal_ref, rsj_ref, gram_ref, lamf, lamg, opa, w2a, ufa, uga,
                    has_w=has_w, **consts)


def _fused_kernel(*refs, has_w, **consts):
    if has_w:
        (x_ref, y_ref, w_ref, b_ref, bwc_ref, bwr_ref, vm1_ref, mmx_ref, mm11_ref,
         f_ref, g_ref, scal_ref, rsj_ref, gram_ref,
         lamf, lamg, opa, w2a, ufa, uga) = refs
        wcol, wrow = bwc_ref[...], bwr_ref[...]
    else:
        (x_ref, y_ref, w_ref, b_ref, vm1_ref, mmx_ref, mm11_ref,
         f_ref, g_ref, scal_ref, rsj_ref, gram_ref,
         lamf, lamg, opa, w2a, ufa, uga) = refs
        wcol = wrow = None

    i, j = pl.program_id(0), pl.program_id(1)
    tb = x_ref.shape[0]
    mxu_dtype = consts["mxu_dtype"]
    # backbone: ONE stacked MXU call [x_i; y_j] @ W + b (single RHS push/drain)
    xy = jnp.concatenate([x_ref[...], y_ref[...]], axis=0)          # (2*tb, D)
    fg = jnp.dot(xy.astype(mxu_dtype), w_ref[...].astype(mxu_dtype),
                 preferred_element_type=jnp.float32) + b_ref[...]
    f_i = fg[:tb]
    g_j = fg[tb:]
    f_ref[...] = f_i
    g_ref[...] = g_j

    is_last = jnp.logical_and(i == pl.num_programs(0) - 1,
                              j == pl.num_programs(1) - 1)
    _tile_loss_body(i, j, is_last, f_i, g_j, wcol, wrow,
                    vm1_ref[...], mmx_ref[...], mm11_ref[...],
                    scal_ref, rsj_ref, gram_ref, lamf, lamg, opa, w2a, ufa, uga,
                    has_w=has_w, **consts)


# ------------------------------ call wrappers ----------------------------------

def _loss_scratch(L):
    return [pltpu.VMEM((L, L), jnp.float32),    # lam_f accumulator
            pltpu.VMEM((L, L), jnp.float32),    # lam_g accumulator
            pltpu.VMEM((1, 1), jnp.float32),    # op_sum accumulator
            pltpu.VMEM((1, 1), jnp.float32),    # sum(w^2) accumulator
            pltpu.VMEM((1, L), jnp.float32),    # uf accumulator
            pltpu.VMEM((1, L), jnp.float32)]    # ug accumulator


def linear_forward(x, w, b):
    x = jnp.asarray(x, jnp.float32)
    w = jnp.asarray(w, jnp.float32)
    B, D = x.shape
    L = w.shape[1]
    tb = _batch_tile(B)
    ni = B // tb
    cost = pl.CostEstimate(flops=2 * B * D * L + B * L, transcendentals=0,
                           bytes_accessed=4 * (B * D + ni * (D * L + L) + B * L))
    raw = 4 * (2 * (tb * D) + D * L + L + 2 * (tb * L))
    return pl.pallas_call(
        _linear_kernel,
        out_shape=jax.ShapeDtypeStruct((B, L), jnp.float32),
        grid=(ni,),
        in_specs=[pl.BlockSpec((tb, D), lambda i: (i, 0)),
                  pl.BlockSpec((D, L), lambda i: (0, 0)),
                  pl.BlockSpec((1, L), lambda i: (0, 0))],
        out_specs=pl.BlockSpec((tb, L), lambda i: (i, 0)),
        compiler_params=pltpu.CompilerParams(
            dimension_semantics=("parallel",),
            vmem_limit_bytes=_vmem_limit(raw)),
        cost_estimate=cost,
    )(x, w, jnp.asarray(b, jnp.float32).reshape(1, L))


def nested_lora_compute_loss(f, g, vm1, mmx, mm11, *, vm0, mm00, add_const,
                             batch_weights=None, mxu_dtype=jnp.float32):
    f = jnp.asarray(f, jnp.float32)
    g = jnp.asarray(g, jnp.float32)
    B, L = f.shape
    tb = _batch_tile(B)
    ni = B // tb
    has_w = batch_weights is not None

    inputs = [f, g]
    in_specs = [pl.BlockSpec((tb, L), lambda i, j: (i, 0)),
                pl.BlockSpec((tb, L), lambda i, j: (j, 0))]
    if has_w:
        bw = jnp.asarray(batch_weights, jnp.float32).reshape(B)
        inputs += [bw.reshape(B, 1), bw.reshape(1, B)]      # column AND row view
        in_specs += [pl.BlockSpec((tb, 1), lambda i, j: (i, 0)),
                     pl.BlockSpec((1, tb), lambda i, j: (0, j))]
    inputs += [vm1, mmx, mm11]
    in_specs += [pl.BlockSpec((1, L), lambda i, j: (0, 0)),
                 pl.BlockSpec((1, L), lambda i, j: (0, 0)),
                 pl.BlockSpec((L, L), lambda i, j: (0, 0))]

    out_shapes = (jax.ShapeDtypeStruct((1, _SCALAR_LANES), jnp.float32),  # scalars
                  jax.ShapeDtypeStruct((B, 1), jnp.float32),              # rs_joint
                  jax.ShapeDtypeStruct((B, B), jnp.float32))              # gram
    out_specs = (pl.BlockSpec((1, _SCALAR_LANES), lambda i, j: (0, 0)),
                 pl.BlockSpec((tb, 1), lambda i, j: (i, 0)),
                 pl.BlockSpec((tb, tb), lambda i, j: (i, j)))

    flops = int(2 * B * B * L + 4 * B * L * L + 8 * B * L)
    bytes_acc = int(4 * ((ni + 1) * B * L + B * B + 3 * B + L * L + 2 * L
                         + _SCALAR_LANES))
    raw = 4 * (2 * (2 * tb * L) + (4 * tb if has_w else 0) + 2 * L + L * L
               + 2 * (tb * tb + tb + _SCALAR_LANES) + 6 * 8 * 128)

    kern = functools.partial(_loss_kernel, has_w=has_w, vm0=vm0, mm00=mm00,
                             inv_b=1.0 / B, add_const=add_const, batch=B,
                             mxu_dtype=mxu_dtype)
    scal, rsj, gram = pl.pallas_call(
        kern,
        out_shape=out_shapes,
        grid=(ni, ni),
        in_specs=in_specs,
        out_specs=out_specs,
        scratch_shapes=_loss_scratch(L),
        compiler_params=pltpu.CompilerParams(
            dimension_semantics=("arbitrary", "arbitrary"),
            vmem_limit_bytes=_vmem_limit(raw)),
        cost_estimate=pl.CostEstimate(flops=flops, transcendentals=0,
                                      bytes_accessed=bytes_acc),
    )(*inputs)

    loss, loss_op, loss_metric = scal[0, 0], scal[0, 1], scal[0, 2]
    return loss, loss_op, loss_metric, rsj.reshape(B), off_diagonal(gram)


def nested_lora_fused_forward_loss(x, y, w_mat, b, vm1, mmx, mm11, *,
                                   vm0, mm00, add_const, batch_weights=None,
                                   mxu_dtype=jnp.float32):
    x = jnp.asarray(x, jnp.float32)
    y = jnp.asarray(y, jnp.float32)
    w_mat = jnp.asarray(w_mat, jnp.float32)
    B, D = x.shape
    L = w_mat.shape[1]
    tb = _batch_tile(B)
    ni = B // tb
    has_w = batch_weights is not None
    b_row = jnp.asarray(b, jnp.float32).reshape(1, L)

    inputs = [x, y, w_mat, b_row]
    in_specs = [pl.BlockSpec((tb, D), lambda i, j: (i, 0)),
                pl.BlockSpec((tb, D), lambda i, j: (j, 0)),
                pl.BlockSpec((D, L), lambda i, j: (0, 0)),
                pl.BlockSpec((1, L), lambda i, j: (0, 0))]
    if has_w:
        bw = jnp.asarray(batch_weights, jnp.float32).reshape(B)
        inputs += [bw.reshape(B, 1), bw.reshape(1, B)]      # column AND row view
        in_specs += [pl.BlockSpec((tb, 1), lambda i, j: (i, 0)),
                     pl.BlockSpec((1, tb), lambda i, j: (0, j))]
    inputs += [vm1, mmx, mm11]
    in_specs += [pl.BlockSpec((1, L), lambda i, j: (0, 0)),
                 pl.BlockSpec((1, L), lambda i, j: (0, 0)),
                 pl.BlockSpec((L, L), lambda i, j: (0, 0))]

    out_shapes = (jax.ShapeDtypeStruct((B, L), jnp.float32),            # f
                  jax.ShapeDtypeStruct((B, L), jnp.float32),            # g
                  jax.ShapeDtypeStruct((1, _SCALAR_LANES), jnp.float32),  # scalars
                  jax.ShapeDtypeStruct((B, 1), jnp.float32),            # rs_joint
                  jax.ShapeDtypeStruct((B, B), jnp.float32))            # gram
    out_specs = (pl.BlockSpec((tb, L), lambda i, j: (i, 0)),
                 pl.BlockSpec((tb, L), lambda i, j: (j, 0)),
                 pl.BlockSpec((1, _SCALAR_LANES), lambda i, j: (0, 0)),
                 pl.BlockSpec((tb, 1), lambda i, j: (i, 0)),
                 pl.BlockSpec((tb, tb), lambda i, j: (i, j)))

    flops = int(4 * B * D * L * ni + 2 * B * B * L + 4 * B * L * L + 8 * B * L)
    bytes_acc = int(4 * ((ni + 1) * B * D + D * L + L + B * B + 3 * B
                         + (ni + 1) * B * L + L * L + 2 * L + _SCALAR_LANES))
    raw = 4 * (2 * (2 * tb * D) + D * L + L + (4 * tb if has_w else 0)
               + 2 * L + L * L
               + 2 * (2 * tb * L + tb * tb + tb + _SCALAR_LANES) + 6 * 8 * 128)

    kern = functools.partial(_fused_kernel, has_w=has_w, vm0=vm0, mm00=mm00,
                             inv_b=1.0 / B, add_const=add_const, batch=B,
                             mxu_dtype=mxu_dtype)
    f_out, g_out, scal, rsj, gram = pl.pallas_call(
        kern,
        out_shape=out_shapes,
        grid=(ni, ni),
        in_specs=in_specs,
        out_specs=out_specs,
        scratch_shapes=_loss_scratch(L),
        compiler_params=pltpu.CompilerParams(
            dimension_semantics=("arbitrary", "arbitrary"),
            vmem_limit_bytes=_vmem_limit(raw)),
        cost_estimate=pl.CostEstimate(flops=flops, transcendentals=0,
                                      bytes_accessed=bytes_acc),
    )(*inputs)

    loss, loss_op, loss_metric = scal[0, 0], scal[0, 1], scal[0, 2]
    return (f_out, g_out, loss, loss_op, loss_metric,
            rsj.reshape(B), off_diagonal(gram))


# ------------------------------- module port -----------------------------------

class NestedLoRAForCDK:
    def __init__(self, model, neigs, step=1, sequential=False,
                 set_first_mode_const=True, linear_params=None,
                 mxu_dtype=jnp.float32):
        self.name = 'nestedlora'
        self.neigs = neigs
        self.sequential = sequential
        if sequential:
            vm, mm = get_sequential_nesting_masks(neigs, set_first_mode_const)
        else:
            end_indices = list(range(step, neigs + 1, step))
            if neigs not in end_indices:
                end_indices.append(neigs)
            step_weights = np.zeros(neigs)
            step_weights[np.array(end_indices) - 1] = 1.0
            step_weights = step_weights / step_weights.sum()
            vm, mm = get_joint_nesting_masks(step_weights, set_first_mode_const)

        # full masks (kept for reference/inspection, matches original attributes)
        self.vector_mask = jnp.asarray(vm, jnp.float32)
        self.matrix_mask = jnp.asarray(mm, jnp.float32)
        self.set_first_mode_const = set_first_mode_const

        # compile-time split so the constant first mode is handled algebraically
        # inside the kernel (no padded arrays anywhere).
        if set_first_mode_const:
            self._vm0 = float(vm[0])
            self._mm00 = float(mm[0, 0])
            vm1 = vm[1:]
            mmx = mm[0, 1:] + mm[1:, 0]   # mmask need not be symmetric (sequential)
            mm11 = mm[1:, 1:]
        else:
            self._vm0 = 0.0
            self._mm00 = 0.0
            vm1 = vm
            mmx = np.zeros_like(vm)
            mm11 = mm
        self._vm1 = jnp.asarray(np.reshape(vm1, (1, -1)), jnp.float32)
        self._mmx = jnp.asarray(np.reshape(mmx, (1, -1)), jnp.float32)
        self._mm11 = jnp.asarray(mm11, jnp.float32)

        self.model = model
        self.linear_params = linear_params   # (W, b) enables the fully fused path
        self.mxu_dtype = mxu_dtype           # set to jnp.bfloat16 on v6e/v7x prod

    def __call__(self, *args):
        return self.model(*args)

    forward = __call__

    def compute_loss(self, f, g, batch_weights=None):
        return nested_lora_compute_loss(
            f, g, self._vm1, self._mmx, self._mm11,
            vm0=self._vm0, mm00=self._mm00,
            add_const=self.set_first_mode_const, batch_weights=batch_weights,
            mxu_dtype=self.mxu_dtype)

    def forward_and_compute_loss(self, x, y, batch_weights=None):
        """Fused path: backbone Linear for x and y + CDK loss in ONE pallas_call."""
        if self.linear_params is None:
            f = self.model(x)
            g = self.model(y)
            return (f, g) + tuple(self.compute_loss(f, g, batch_weights))
        W, b = self.linear_params
        return nested_lora_fused_forward_loss(
            x, y, W, b, self._vm1, self._mmx, self._mm11,
            vm0=self._vm0, mm00=self._mm00,
            add_const=self.set_first_mode_const, batch_weights=batch_weights,
            mxu_dtype=self.mxu_dtype)


# ------------------------------ reference check --------------------------------

def _reference_loss(f, g, vmask, mmask, set_first_mode_const=True,
                    batch_weights=None):
    if set_first_mode_const:
        ones = jnp.ones((f.shape[0], 1), f.dtype)
        f = jnp.concatenate([ones, f], axis=1)
        g = jnp.concatenate([ones, g], axis=1)
    if batch_weights is not None:
        bw = jnp.asarray(batch_weights, f.dtype).reshape(f.shape[0], 1)
        f = f * bw
        g = g * bw
    B = f.shape[0]
    hp = jax.lax.Precision.HIGHEST
    lam_f = jnp.einsum('bl,bm->lm', f, f, precision=hp) / B
    lam_g = jnp.einsum('bl,bm->lm', g, g, precision=hp) / B
    metric = jnp.sum(mmask * lam_f * lam_g)
    op = -2.0 * jnp.mean(jnp.einsum('l,bl,bl->b', vmask, f, g, precision=hp))
    gram = jnp.einsum('bl,cl->bc', f, g, precision=hp)
    return op + metric, op, metric, jnp.diagonal(gram), off_diagonal(gram)


if __name__ == "__main__":
    B, D, NEIGS = 8, 32, 4
    key = jax.random.PRNGKey(0)
    k1, k2, k3, k4, k5 = jax.random.split(key, 5)

    # deterministic backbone parameters (Linear D -> NEIGS)
    W = jax.random.normal(k1, (D, NEIGS), jnp.float32) * 0.1
    bias = jax.random.normal(k5, (NEIGS,), jnp.float32) * 0.05

    model = lambda inp: linear_forward(inp, W, bias)
    module = NestedLoRAForCDK(model, neigs=NEIGS, step=1, sequential=False,
                              set_first_mode_const=True, linear_params=(W, bias))

    x = jax.random.normal(k2, (B, D), jnp.float32)
    y = jax.random.normal(k3, (B, D), jnp.float32)

    hp = jax.lax.Precision.HIGHEST
    f_ref = jnp.dot(x, W, precision=hp) + bias
    g_ref = jnp.dot(y, W, precision=hp) + bias

    def check(got, want, msg):
        np.testing.assert_allclose(np.asarray(got), np.asarray(want),
                                   rtol=1e-5, atol=1e-5, err_msg=msg)

    # 1) module forward (= model(x)) via Pallas linear kernel
    f = module(x)
    g = module(y)
    f, g = jax.block_until_ready((f, g))
    check(f, f_ref, "forward f")
    check(g, g_ref, "forward g")

    # 2) standalone compute_loss kernel (const mode + masks handled in-kernel)
    out = jax.block_until_ready(module.compute_loss(f, g))
    ref = _reference_loss(f, g, module.vector_mask, module.matrix_mask, True)
    for got, want in zip(out, ref):
        check(got, want, "compute_loss")
    loss, loss_op, loss_metric, rs_joint, rs_indep = out
    assert rs_joint.shape == (B,) and rs_indep.shape == (B * B - B,)

    # 3) fully fused forward + loss (single pallas_call)
    fused = jax.block_until_ready(module.forward_and_compute_loss(x, y))
    check(fused[0], f_ref, "fused f")
    check(fused[1], g_ref, "fused g")
    ref2 = _reference_loss(fused[0], fused[1],
                           module.vector_mask, module.matrix_mask, True)
    for got, want in zip(fused[2:], ref2):
        check(got, want, "fused loss")

    # 4) batch_weights handled in-kernel (both paths)
    bw = jax.random.uniform(k4, (B, 1), jnp.float32, minval=0.5, maxval=1.5)
    out_w = jax.block_until_ready(module.compute_loss(f, g, batch_weights=bw))
    ref_w = _reference_loss(f, g, module.vector_mask, module.matrix_mask, True, bw)
    for got, want in zip(out_w, ref_w):
        check(got, want, "weighted compute_loss")
    fused_w = jax.block_until_ready(
        module.forward_and_compute_loss(x, y, batch_weights=bw))
    ref_fw = _reference_loss(fused_w[0], fused_w[1],
                             module.vector_mask, module.matrix_mask, True, bw)
    for got, want in zip(fused_w[2:], ref_fw):
        check(got, want, "weighted fused loss")

    # 5) sequential nesting masks (asymmetric matrix mask)
    module_seq = NestedLoRAForCDK(model, neigs=NEIGS, sequential=True,
                                  set_first_mode_const=True)
    out_seq = jax.block_until_ready(module_seq.compute_loss(f, g))
    ref_seq = _reference_loss(f, g, module_seq.vector_mask,
                              module_seq.matrix_mask, True)
    for got, want in zip(out_seq, ref_seq):
        check(got, want, "sequential compute_loss")

    # 6) set_first_mode_const=False path
    module_nc = NestedLoRAForCDK(model, neigs=NEIGS, step=2, sequential=False,
                                 set_first_mode_const=False)
    out_nc = jax.block_until_ready(module_nc.compute_loss(f, g))
    ref_nc = _reference_loss(f, g, module_nc.vector_mask,
                             module_nc.matrix_mask, False)
    for got, want in zip(out_nc, ref_nc):
        check(got, want, "no-const compute_loss")

    print("KERNEL_OK")
</pallas_src>

<mosaic_0001>
module attributes {stable_mosaic.version = 11 : i64} {
  func.func @_linear_kernel(%arg0: i32, %arg1: memref<8x32xf32, #tpu.memory_space<vmem>>, %arg2: memref<32x4xf32, #tpu.memory_space<vmem>>, %arg3: memref<1x4xf32, #tpu.memory_space<vmem>>, %arg4: memref<8x4xf32, #tpu.memory_space<vmem>>) attributes {dimension_semantics = [#tpu.dimension_semantics<parallel>], iteration_bounds = array<i64: 1>, scalar_prefetch = 0 : i64, scratch_operands = 0 : i64, tpu.core_type = #tpu.core_type<tc>, window_params = [{transform_indices = @transform_0, window_bounds = array<i64: 8, 32>}, {pipeline_mode = #tpu.pipeline_mode<synchronous>, transform_indices = @transform_1, window_bounds = array<i64: 32, 4>}, {pipeline_mode = #tpu.pipeline_mode<synchronous>, transform_indices = @transform_2, window_bounds = array<i64: 1, 4>}, {transform_indices = @transform_3, window_bounds = array<i64: 8, 4>}]} {
    %c0 = arith.constant 0 : index
    %c0_0 = arith.constant 0 : index
    %0 = vector.load %arg1[%c0, %c0_0] : memref<8x32xf32, #tpu.memory_space<vmem>>, vector<8x32xf32>
    %c0_1 = arith.constant 0 : index
    %c0_2 = arith.constant 0 : index
    %1 = vector.load %arg2[%c0_1, %c0_2] : memref<32x4xf32, #tpu.memory_space<vmem>>, vector<32x4xf32>
    %cst = arith.constant dense<0.000000e+00> : vector<8x4xf32>
    %2 = tpu.matmul %0, %1, %cst {dimension_numbers = #tpu.dot_dimension_numbers<[1], [0], [0], [1], [0, 0, 1, 1], [], []>} : vector<8x32xf32>, vector<32x4xf32>, vector<8x4xf32> -> vector<8x4xf32>
    %c0_3 = arith.constant 0 : index
    %c0_4 = arith.constant 0 : index
    %3 = vector.load %arg3[%c0_3, %c0_4] : memref<1x4xf32, #tpu.memory_space<vmem>>, vector<1x4xf32>
    %4 = vector.broadcast %3 : vector<1x4xf32> to vector<8x4xf32>
    %5 = arith.addf %2, %4 : vector<8x4xf32>
    %c0_5 = arith.constant 0 : index
    %c0_6 = arith.constant 0 : index
    %6 = vector.load %arg4[%c0_5, %c0_6] : memref<8x4xf32, #tpu.memory_space<vmem>>, vector<8x4xf32>
    tpu.vector_store %arg4[%c0_5, %c0_6], %5 {strides = array<i32>} : memref<8x4xf32, #tpu.memory_space<vmem>>, vector<8x4xf32>,
    return
  }
  func.func @transform_0(%arg0: i32) -> (i32, i32) {
    %c0_i32 = arith.constant 0 : i32
    %c0_i32_0 = arith.constant 0 : i32
    return %arg0, %c0_i32 : i32, i32
  }
  func.func @transform_1(%arg0: i32) -> (i32, i32) {
    %c0_i32 = arith.constant 0 : i32
    %c0_i32_0 = arith.constant 0 : i32
    %c0_i32_1 = arith.constant 0 : i32
    return %c0_i32, %c0_i32_0 : i32, i32
  }
  func.func @transform_2(%arg0: i32) -> (i32, i32) {
    %c0_i32 = arith.constant 0 : i32
    %c0_i32_0 = arith.constant 0 : i32
    %c0_i32_1 = arith.constant 0 : i32
    return %c0_i32, %c0_i32_0 : i32, i32
  }
  func.func @transform_3(%arg0: i32) -> (i32, i32) {
    %c0_i32 = arith.constant 0 : i32
    %c0_i32_0 = arith.constant 0 : i32
    return %arg0, %c0_i32 : i32, i32
  }
}

</mosaic_0001>

<llo_original>
// kernel: tpu_custom_call.1
$region0: #{tpu_custom_call.1}
  #allocation0 [shape = 'u32[]', space=smem, size = 0x4, offset = 0x4, fixed_abs, tag = 'smem constant byte address 0x4 - core index']
  #allocation1 [shape = 'u32[144,128]{1,0:T(1,128)}', space=vmem, size = 0x12000, scoped, tag = 'internal scratch']
  %s0 = inlined_call_operand.vmem [shape: f32[8,32], index: 0, kind: input, shape index: {}]
  %s1 = inlined_call_operand.vmem [shape: f32[32,4], index: 1, kind: input, shape index: {}]
  %s2 = inlined_call_operand.vmem [shape: f32[1,4], index: 2, kind: input, shape index: {}]
  %s3 = inlined_call_operand.vmem [shape: f32[8,4], index: 3, kind: output, shape index: {}]
  %s4 = sld [smem:[#allocation0]]
  $region22: #{tpu_custom_call.1} parent=0
    _
  %s6 = ssub.s32 1, %s4
  %s7 = scalar_select 0, %s6, %s4
  // Predicated region
  $region2: #{tpu_custom_call.1} parent=0 // pred_check
    _
  $region3: #{tpu_custom_call.1} parent=0 // pred_check_branch
    %9 = sbr.rel (0) target = $region5
  $region4: #{tpu_custom_call.1} parent=0 // pred_region
    _
  $region5: #{tpu_custom_call.1} parent=0 // pred_fallthru
    _
  // Predicated region
  $region6: #{tpu_custom_call.1} parent=0 // pred_check
    _
  $region7: #{tpu_custom_call.1} parent=0 // pred_check_branch
    %11 = sbr.rel (0) target = $region9
  $region8: #{tpu_custom_call.1} parent=0 // pred_region
    _
  $region9: #{tpu_custom_call.1} parent=0 // pred_fallthru
    _
  // Predicated region
  $region10: #{tpu_custom_call.1} parent=0 // pred_check
    _
  $region11: #{tpu_custom_call.1} parent=0 // pred_check_branch
    %13 = sbr.rel (0) target = $region13
  $region12: #{tpu_custom_call.1} parent=0 // pred_region
    _
  $region13: #{tpu_custom_call.1} parent=0 // pred_fallthru
    _
  %v14 = vld [vmem:[%s0] sm:$0xff]
  %v15 = vld [vmem:[%s1] sm:$0xff]
  %v16 = vld [vmem:[%s1 + $0x8] sm:$0xff]
  %v17 = vld [vmem:[%s1 + $0x10] sm:$0xff]
  %v18 = vld [vmem:[%s1 + $0x18] sm:$0xff]
  %v19 = vld [vmem:[%s2] sm:$0x1]
  %v21 = vlaneseq
  %v22 = vshrl.u32 %v21, 7
  %v23 = vsub.s32 0, %v22
  %v24 = vrot.slane %v19, %v23
  %vm26 = vcmask 261120
  %v28 = vsel %vm26, %v14, 0
  %30 = vmatprep.subr.mxu0 0.0
  %31 = vmatpush1.msra.mxu0 0.0
  %32 = vmatprep.subr.mxu0 0.0
  %33 = vmatpush1.msra.mxu0 0.0
  %34 = vmatprep.subr.mxu0 0.0
  %35 = vmatpush1.msra.mxu0 0.0
  %36 = vmatprep.subr.mxu0 0.0
  %37 = vmatpush1.msra.mxu0 0.0
  %38 = vmatprep.subr.mxu0 0.0
  %39 = vmatpush1.msra.mxu0 0.0
  %40 = vmatprep.subr.mxu0 0.0
  %41 = vmatpush1.msra.mxu0 0.0
  %42 = vmatprep.subr.mxu0 0.0
  %43 = vmatpush1.msra.mxu0 0.0
  %44 = vmatprep.subr.mxu0 0.0
  %45 = vmatpush1.msra.mxu0 0.0
  %46 = vmatprep.subr.mxu0 0.0
  %47 = vmatpush1.msra.mxu0 0.0
  %48 = vmatprep.subr.mxu0 0.0
  %49 = vmatpush1.msra.mxu0 0.0
  %50 = vmatprep.subr.mxu0 0.0
  %51 = vmatpush1.msra.mxu0 0.0
  %52 = vmatprep.subr.mxu0 0.0
  %53 = vmatpush1.msra.mxu0 0.0
  %54 = vmatprep.subr.mxu0 0.0
  %55 = vmatpush1.msra.mxu0 %v18
  %56 = vmatprep.subr.mxu0 0.0
  %57 = vmatpush1.msra.mxu0 %v17
  %58 = vmatprep.subr.mxu0 0.0
  %59 = vmatpush1.msra.mxu0 %v16
  %60 = vmatprep.subr.mxu0 0.0
  %61 = vmatpush1.msra.mxu0 %v15
  %62 = vmatprep.subr.mxu0 0.0
  %63 = vmatpush2.msra.mxu0 0.0
  %64 = vmatprep.subr.mxu0 0.0
  %65 = vmatpush2.msra.mxu0 0.0
  %66 = vmatprep.subr.mxu0 0.0
  %67 = vmatpush2.msra.mxu0 0.0
  %68 = vmatprep.subr.mxu0 0.0
  %69 = vmatpush2.msra.mxu0 0.0
  %70 = vmatprep.subr.mxu0 0.0
  %71 = vmatpush2.msra.mxu0 0.0
  %72 = vmatprep.subr.mxu0 0.0
  %73 = vmatpush2.msra.mxu0 0.0
  %74 = vmatprep.subr.mxu0 0.0
  %75 = vmatpush2.msra.mxu0 0.0
  %76 = vmatprep.subr.mxu0 0.0
  %77 = vmatpush2.msra.mxu0 0.0
  %78 = vmatprep.subr.mxu0 0.0
  %79 = vmatpush2.msra.mxu0 0.0
  %80 = vmatprep.subr.mxu0 0.0
  %81 = vmatpush2.msra.mxu0 0.0
  %82 = vmatprep.subr.mxu0 0.0
  %83 = vmatpush2.msra.mxu0 0.0
  %84 = vmatprep.subr.mxu0 0.0
  %85 = vmatpush2.msra.mxu0 0.0
  %86 = vmatprep.subr.mxu0 0.0
  %87 = vmatpush2.msra.mxu0 0.0
  %88 = vmatprep.subr.mxu0 0.0
  %89 = vmatpush2.msra.mxu0 0.0
  %90 = vmatprep.subr.mxu0 0.0
  %91 = vmatpush2.msra.mxu0 0.0
  %92 = vmatprep.subr.mxu0 0.0
  %93 = vmatpush2.msra.mxu0 0.0
  %94 = vmatprep.mubr.f32.mxu0 0.0
  %95 = vmatmul.mubr.f32.gmra.mxu0 %v28
  %v96 = vpop.f32.mrf.mxu0
  %v97 = vadd.f32 %v24, %v96
  %v98 = vpop.f32.mrf.mxu0
  %99 = vdwg.mxu0
  %vm100 = vcmask 31744
  %101 = vst.msk [vmem:[%s3] sm:$0xff] %vm100, %v97
  // Predicated region
  $region14: #{tpu_custom_call.1} parent=0 // pred_check
    _
  $region15: #{tpu_custom_call.1} parent=0 // pred_check_branch
    %103 = sbr.rel (0) target = $region17
  $region16: #{tpu_custom_call.1} parent=0 // pred_region
    _
  $region17: #{tpu_custom_call.1} parent=0 // pred_fallthru
    _
  // Predicated region
  $region18: #{tpu_custom_call.1} parent=0 // pred_check
    _
  $region19: #{tpu_custom_call.1} parent=0 // pred_check_branch
    %105 = sbr.rel (0) target = $region21
  $region20: #{tpu_custom_call.1} parent=0 // pred_region
    _
  $region21: #{tpu_custom_call.1} parent=0 // pred_fallthru
    _

</llo_original>
